<compile_context>
chip_gen: v7x
topology: tpu7x:2x2x1
jax: 0.10.0
libtpu: 0.0.40
codegen_flags: <defaults>
</compile_context>

<pallas_src>
import functools

import jax
import jax.numpy as jnp
from jax import lax
from jax.experimental import pallas as pl
from jax.experimental.pallas import tpu as pltpu


# dot_general dims for "x @ w.T" without materializing the transpose:
# contract dim 1 of lhs with dim 1 of rhs.
_DN_NT = (((1,), (1,)), ((), ()))

_CompilerParams = getattr(pltpu, "CompilerParams", None) or getattr(
    pltpu, "TPUCompilerParams")

if hasattr(pl, "reciprocal"):
    def _recip(x):
        return pl.reciprocal(x, approx=True)
else:  # very old jax fallback
    def _recip(x):
        return 1.0 / x


@functools.lru_cache(maxsize=None)
def _vmem_limit_bytes():
    # Generation-aware scoped-VMEM limit: leave ~8 MiB headroom below physical
    # capacity and never ask for more than 100 MiB (v5e/v6e: 128 MiB physical,
    # v7x: 64 MiB physical).
    try:
        cap = pltpu.get_tpu_info().vmem_capacity_bytes
    except Exception:
        cap = 64 * 1024 * 1024
    return int(min(cap - 8 * 1024 * 1024, 100 * 1024 * 1024))


def _compiler_params(dims):
    return _CompilerParams(dimension_semantics=dims,
                           vmem_limit_bytes=_vmem_limit_bytes())


def _pick_tile(dim, target, unit):
    """Largest tile <= target that divides dim and is a multiple of `unit`;
    falls back to the full dim (always legal: block == full array dim)."""
    if dim <= target:
        return dim
    t = (target // unit) * unit
    while t >= unit:
        if dim % t == 0:
            return t
        t -= unit
    return dim


# ---------------------------------------------------------------------------
# Kernel A: grouped ParallelLinear matmul, (group, M, N, K)-tiled.
# Used once in fused Q/K/V mode (3 weights sharing one activation block) and
# once for the out_proj (single weight, full-E contraction).
# ---------------------------------------------------------------------------
def _plinear_kernel(num_outs, x_ref, *refs):
    w_refs = refs[:num_outs]
    b_refs = refs[num_outs:2 * num_outs]
    o_refs = refs[2 * num_outs:3 * num_outs]
    acc_refs = refs[3 * num_outs:]

    kk = pl.program_id(3)

    @pl.when(kk == 0)
    def _():
        for acc in acc_refs:
            acc[...] = jnp.zeros_like(acc)

    x = x_ref[0]                                   # (tm, tk) bf16, shared
    for w_ref, acc in zip(w_refs, acc_refs):
        acc[...] += lax.dot_general(x, w_ref[0], _DN_NT,
                                    preferred_element_type=jnp.float32)

    @pl.when(kk == pl.num_programs(3) - 1)
    def _():
        for b_ref, o_ref, acc in zip(b_refs, o_refs, acc_refs):
            o_ref[0] = (acc[...] + b_ref[...]).astype(o_ref.dtype)


def _parallel_linear(x, weights, biases, *, out_dtype,
                     tm=256, tn=512, tk=512):
    """y_g = x_g @ W_g^T + b for each group g, for each (W, b) pair."""
    n, M, K = x.shape
    N = weights[0].shape[1]
    num = len(weights)
    tm = _pick_tile(M, tm, 8)
    tn = _pick_tile(N, tn, 128)
    tk = _pick_tile(K, tk, 128)

    x_spec = pl.BlockSpec((1, tm, tk), lambda g, i, j, kk: (g, i, kk))
    w_spec = pl.BlockSpec((1, tn, tk), lambda g, i, j, kk: (g, j, kk))
    b_spec = pl.BlockSpec((1, tn), lambda g, i, j, kk: (0, j))
    o_spec = pl.BlockSpec((1, tm, tn), lambda g, i, j, kk: (g, i, j))

    outs = pl.pallas_call(
        functools.partial(_plinear_kernel, num),
        out_shape=tuple(jax.ShapeDtypeStruct((n, M, N), out_dtype)
                        for _ in range(num)),
        grid=(n, M // tm, N // tn, K // tk),
        in_specs=[x_spec] + [w_spec] * num + [b_spec] * num,
        out_specs=tuple(o_spec for _ in range(num)),
        scratch_shapes=[pltpu.VMEM((tm, tn), jnp.float32) for _ in range(num)],
        compiler_params=_compiler_params(
            ("parallel", "parallel", "parallel", "arbitrary")),
    )(x, *weights, *biases)
    if not isinstance(outs, (list, tuple)):
        outs = (outs,)
    return tuple(outs)


# ---------------------------------------------------------------------------
# Kernel B: per-(group, batch, head, q-tile) attention with the reference's
# double softmax.  Scaling is pre-folded into q; out_proj happens afterwards
# as one full-E contraction through Kernel A.
# ---------------------------------------------------------------------------
def _attention_kernel(q_ref, k_ref, v_ref, o_ref):
    q = q_ref[0, 0, 0]                              # (tq, D) bf16, pre-scaled
    k = k_ref[0, 0, 0]                              # (S, D)  bf16
    v = v_ref[0, 0, 0]                              # (S, D)  bf16
    s = lax.dot_general(q, k, _DN_NT,
                        preferred_element_type=jnp.float32)     # (tq, S) f32
    # The PyTorch reference applies softmax twice (before and after the
    # None-mask branch); reproduce exactly.  The second softmax skips the
    # max-subtraction since its inputs already lie in (0, 1].
    m = jnp.max(s, axis=-1, keepdims=True)
    e1 = jnp.exp(s - m)
    p1 = e1 * _recip(jnp.sum(e1, axis=-1, keepdims=True))
    e2 = jnp.exp(p1)
    p2 = e2 * _recip(jnp.sum(e2, axis=-1, keepdims=True))
    o = jnp.dot(p2.astype(v.dtype), v, preferred_element_type=jnp.float32)
    o_ref[0, 0, 0] = o.astype(o_ref.dtype)


def _attention(q, k, v, *, tq=128):
    n, B, H, T, D = q.shape
    S = k.shape[3]
    tq = _pick_tile(T, tq, 8)
    q_spec = pl.BlockSpec((1, 1, 1, tq, D), lambda g, b, h, i: (g, b, h, i, 0))
    kv_spec = pl.BlockSpec((1, 1, 1, S, D), lambda g, b, h, i: (g, b, h, 0, 0))
    return pl.pallas_call(
        _attention_kernel,
        out_shape=jax.ShapeDtypeStruct((n, B, H, T, D), q.dtype),
        grid=(n, B, H, T // tq),
        in_specs=[q_spec, kv_spec, kv_spec],
        out_specs=q_spec,
        compiler_params=_compiler_params(("parallel",) * 4),
    )(q, k, v)


# ---------------------------------------------------------------------------
# Full ParallelOPTAttention forward (self-attention, no mask / cache).
# ---------------------------------------------------------------------------
def parallel_opt_attention(hidden_states, params, *, num_heads, num_parallel,
                           epsilon, compute_dtype=jnp.bfloat16):
    bsz, T, E = hidden_states.shape
    n = num_parallel
    B = bsz // n
    H = num_heads
    D = E // H
    M = B * T
    scale = D ** -0.5
    f32 = jnp.float32

    # Effective per-group weights (W + eps*mu) built ONCE per forward; the
    # attention scaling (head_dim**-0.5) is folded into the q weights/bias.
    def w_eff(w, mu, s=1.0):
        return ((w[None] + epsilon * mu) * s).astype(compute_dtype)

    wq = w_eff(params["q_w"], params["q_mu"], scale)
    wk = w_eff(params["k_w"], params["k_mu"])
    wv = w_eff(params["v_w"], params["v_mu"])
    wo = w_eff(params["o_w"], params["o_mu"])
    bq = (params["q_b"] * scale).reshape(1, E).astype(f32)
    bk = params["k_b"].reshape(1, E).astype(f32)
    bv = params["v_b"].reshape(1, E).astype(f32)
    bo = params["o_b"].reshape(1, E).astype(f32)

    x = hidden_states.reshape(n, M, E).astype(compute_dtype)

    # Fused Q/K/V ParallelLinear: one (M, N, K)-tiled pipeline, activation
    # block read once per step for all three projections.
    q, k, v = _parallel_linear(x, [wq, wk, wv], [bq, bk, bv],
                               out_dtype=compute_dtype)

    # Layout plumbing in the wrapper so BlockSpec hands the attention kernel
    # lane-contiguous per-head (tq, D) tiles (no in-kernel head slicing).
    def heads(t):
        return t.reshape(n, B, T, H, D).transpose(0, 1, 3, 2, 4)

    attn = _attention(heads(q), heads(k), heads(v))          # (n, B, H, T, D)
    attn = attn.transpose(0, 1, 3, 2, 4).reshape(n, M, E)

    # out_proj as one full-E-contraction ParallelLinear (full MXU depth).
    (out,) = _parallel_linear(attn, [wo], [bo], out_dtype=f32)
    return out.reshape(bsz, T, E)


# ---------------------------------------------------------------------------
# Pure-JAX f32 reference (mirrors PyTorch semantics) for correctness check.
# ---------------------------------------------------------------------------
def _ref_plinear(x, w, b, mu, eps, n):
    nB, T, E_in = x.shape
    B = nB // n
    xs = x.reshape(n, B, T, E_in)
    f = jnp.einsum("nbti,oi->nbto", xs, w) + b
    p = eps * jnp.einsum("nbti,nio->nbto", xs, jnp.swapaxes(mu, -1, -2))
    return (f + p).reshape(nB, T, w.shape[0])


def _ref_attention(h, params, num_heads, n, eps):
    bsz, tgt, E = h.shape
    H, D = num_heads, E // num_heads
    scale = D ** -0.5
    q = _ref_plinear(h, params["q_w"], params["q_b"], params["q_mu"], eps, n) * scale
    k = _ref_plinear(h, params["k_w"], params["k_b"], params["k_mu"], eps, n)
    v = _ref_plinear(h, params["v_w"], params["v_b"], params["v_mu"], eps, n)
    sh = lambda t: t.reshape(bsz, tgt, H, D).transpose(0, 2, 1, 3).reshape(bsz * H, tgt, D)
    q, k, v = sh(q), sh(k), sh(v)
    s = jnp.einsum("bqd,bkd->bqk", q, k)
    p = jax.nn.softmax(jax.nn.softmax(s, axis=-1), axis=-1)
    o = jnp.einsum("bqk,bkd->bqd", p, v)
    o = o.reshape(bsz, H, tgt, D).transpose(0, 2, 1, 3).reshape(bsz, tgt, E)
    return _ref_plinear(o, params["o_w"], params["o_b"], params["o_mu"], eps, n)


# ---------------------------------------------------------------------------
if __name__ == "__main__":
    embed_dim = 32
    num_heads = 4
    num_parallel = 2
    B = 1
    bsz = num_parallel * B
    tgt_len = 8
    epsilon = 0.01

    key = jax.random.PRNGKey(0)
    ks = jax.random.split(key, 13)

    def rademacher(k, shape):
        return (jax.random.bernoulli(k, 0.5, shape).astype(jnp.float32) * 2.0
                - 1.0)

    params = {
        "q_w": 0.1 * jax.random.normal(ks[0], (embed_dim, embed_dim), jnp.float32),
        "q_b": 0.1 * jax.random.normal(ks[1], (embed_dim,), jnp.float32),
        "k_w": 0.1 * jax.random.normal(ks[2], (embed_dim, embed_dim), jnp.float32),
        "k_b": 0.1 * jax.random.normal(ks[3], (embed_dim,), jnp.float32),
        "v_w": 0.1 * jax.random.normal(ks[4], (embed_dim, embed_dim), jnp.float32),
        "v_b": 0.1 * jax.random.normal(ks[5], (embed_dim,), jnp.float32),
        "o_w": 0.1 * jax.random.normal(ks[6], (embed_dim, embed_dim), jnp.float32),
        "o_b": 0.1 * jax.random.normal(ks[7], (embed_dim,), jnp.float32),
        # TODO(synk): PyTorch draws mu with torch.randint at every forward
        # call; here it is a fixed deterministic Rademacher draw (in-kernel
        # pltpu.prng_random_bits generation is the production path).
        "q_mu": rademacher(ks[8], (num_parallel, embed_dim, embed_dim)),
        "k_mu": rademacher(ks[9], (num_parallel, embed_dim, embed_dim)),
        "v_mu": rademacher(ks[10], (num_parallel, embed_dim, embed_dim)),
        "o_mu": rademacher(ks[11], (num_parallel, embed_dim, embed_dim)),
    }

    hidden_states = jax.random.normal(ks[12], (bsz, tgt_len, embed_dim),
                                      jnp.float32)

    out = parallel_opt_attention(hidden_states, params, num_heads=num_heads,
                                 num_parallel=num_parallel, epsilon=epsilon)
    out = jax.block_until_ready(out)

    ref = _ref_attention(hidden_states, params, num_heads, num_parallel,
                         epsilon)
    assert out.shape == (bsz, tgt_len, embed_dim)
    # bf16 MXU operands + approx-reciprocal softmax vs. the f32 reference:
    # loosened tolerance (typical max-abs error ~1e-2 at these magnitudes).
    err = float(jnp.max(jnp.abs(out - ref)))
    assert err < 5e-2, err
    print("KERNEL_OK")
</pallas_src>

<mosaic_0001>
module attributes {stable_mosaic.version = 11 : i64} {
  func.func @_plinear_kernel(%arg0: i32, %arg1: i32, %arg2: i32, %arg3: i32, %arg4: memref<1x8x32xbf16, #tpu.memory_space<vmem>>, %arg5: memref<1x32x32xbf16, #tpu.memory_space<vmem>>, %arg6: memref<1x32x32xbf16, #tpu.memory_space<vmem>>, %arg7: memref<1x32x32xbf16, #tpu.memory_space<vmem>>, %arg8: memref<1x32xf32, #tpu.memory_space<vmem>>, %arg9: memref<1x32xf32, #tpu.memory_space<vmem>>, %arg10: memref<1x32xf32, #tpu.memory_space<vmem>>, %arg11: memref<1x8x32xbf16, #tpu.memory_space<vmem>>, %arg12: memref<1x8x32xbf16, #tpu.memory_space<vmem>>, %arg13: memref<1x8x32xbf16, #tpu.memory_space<vmem>>, %arg14: memref<8x32xf32, #tpu.memory_space<vmem>>, %arg15: memref<8x32xf32, #tpu.memory_space<vmem>>, %arg16: memref<8x32xf32, #tpu.memory_space<vmem>>) attributes {dimension_semantics = [#tpu.dimension_semantics<parallel>, #tpu.dimension_semantics<parallel>, #tpu.dimension_semantics<parallel>, #tpu.dimension_semantics<arbitrary>], iteration_bounds = array<i64: 2, 1, 1, 1>, scalar_prefetch = 0 : i64, scratch_operands = 3 : i64, tpu.core_type = #tpu.core_type<tc>, window_params = [{transform_indices = @transform_0, window_bounds = array<i64: 1, 8, 32>}, {transform_indices = @transform_1, window_bounds = array<i64: 1, 32, 32>}, {transform_indices = @transform_2, window_bounds = array<i64: 1, 32, 32>}, {transform_indices = @transform_3, window_bounds = array<i64: 1, 32, 32>}, {transform_indices = @transform_4, window_bounds = array<i64: 1, 32>}, {transform_indices = @transform_5, window_bounds = array<i64: 1, 32>}, {transform_indices = @transform_6, window_bounds = array<i64: 1, 32>}, {transform_indices = @transform_7, window_bounds = array<i64: 1, 8, 32>}, {transform_indices = @transform_8, window_bounds = array<i64: 1, 8, 32>}, {transform_indices = @transform_9, window_bounds = array<i64: 1, 8, 32>}]} {
    %c0_i32 = arith.constant 0 : i32
    %0 = arith.cmpi eq, %arg3, %c0_i32 : i32
    %1 = arith.extui %0 : i1 to i32
    %c0_i32_0 = arith.constant 0 : i32
    %2 = arith.cmpi ne, %1, %c0_i32_0 : i32
    scf.if %2 {
      %cst_28 = arith.constant 0.000000e+00 : f32
      %26 = vector.broadcast %cst_28 : f32 to vector<8x32xf32>
      %c0_29 = arith.constant 0 : index
      %c0_30 = arith.constant 0 : index
      %27 = vector.load %arg14[%c0_29, %c0_30] : memref<8x32xf32, #tpu.memory_space<vmem>>, vector<8x32xf32>
      tpu.vector_store %arg14[%c0_29, %c0_30], %26 {strides = array<i32>} : memref<8x32xf32, #tpu.memory_space<vmem>>, vector<8x32xf32>,
      %cst_31 = arith.constant 0.000000e+00 : f32
      %28 = vector.broadcast %cst_31 : f32 to vector<8x32xf32>
      %c0_32 = arith.constant 0 : index
      %c0_33 = arith.constant 0 : index
      %29 = vector.load %arg15[%c0_32, %c0_33] : memref<8x32xf32, #tpu.memory_space<vmem>>, vector<8x32xf32>
      tpu.vector_store %arg15[%c0_32, %c0_33], %28 {strides = array<i32>} : memref<8x32xf32, #tpu.memory_space<vmem>>, vector<8x32xf32>,
      %cst_34 = arith.constant 0.000000e+00 : f32
      %30 = vector.broadcast %cst_34 : f32 to vector<8x32xf32>
      %c0_35 = arith.constant 0 : index
      %c0_36 = arith.constant 0 : index
      %31 = vector.load %arg16[%c0_35, %c0_36] : memref<8x32xf32, #tpu.memory_space<vmem>>, vector<8x32xf32>
      tpu.vector_store %arg16[%c0_35, %c0_36], %30 {strides = array<i32>} : memref<8x32xf32, #tpu.memory_space<vmem>>, vector<8x32xf32>,
    } else {
    }
    %c0 = arith.constant 0 : index
    %c0_1 = arith.constant 0 : index
    %c0_2 = arith.constant 0 : index
    %3 = vector.load %arg4[%c0, %c0_1, %c0_2] : memref<1x8x32xbf16, #tpu.memory_space<vmem>>, vector<1x8x32xbf16>
    %4 = vector.shape_cast %3 : vector<1x8x32xbf16> to vector<8x32xbf16>
    %c0_3 = arith.constant 0 : index
    %c0_4 = arith.constant 0 : index
    %5 = vector.load %arg14[%c0_3, %c0_4] : memref<8x32xf32, #tpu.memory_space<vmem>>, vector<8x32xf32>
    %c0_5 = arith.constant 0 : index
    %c0_6 = arith.constant 0 : index
    %c0_7 = arith.constant 0 : index
    %6 = vector.load %arg5[%c0_5, %c0_6, %c0_7] : memref<1x32x32xbf16, #tpu.memory_space<vmem>>, vector<1x32x32xbf16>
    %7 = vector.shape_cast %6 : vector<1x32x32xbf16> to vector<32x32xbf16>
    %cst = arith.constant dense<0.000000e+00> : vector<8x32xf32>
    %8 = tpu.matmul %4, %7, %cst {dimension_numbers = #tpu.dot_dimension_numbers<[1], [1], [0], [0], [0, 0, 1, 0], [], []>} : vector<8x32xbf16>, vector<32x32xbf16>, vector<8x32xf32> -> vector<8x32xf32>
    %9 = arith.addf %5, %8 : vector<8x32xf32>
    %c0_8 = arith.constant 0 : index
    %c0_9 = arith.constant 0 : index
    %10 = vector.load %arg14[%c0_8, %c0_9] : memref<8x32xf32, #tpu.memory_space<vmem>>, vector<8x32xf32>
    tpu.vector_store %arg14[%c0_8, %c0_9], %9 {strides = array<i32>} : memref<8x32xf32, #tpu.memory_space<vmem>>, vector<8x32xf32>,
    %c0_10 = arith.constant 0 : index
    %c0_11 = arith.constant 0 : index
    %11 = vector.load %arg15[%c0_10, %c0_11] : memref<8x32xf32, #tpu.memory_space<vmem>>, vector<8x32xf32>
    %c0_12 = arith.constant 0 : index
    %c0_13 = arith.constant 0 : index
    %c0_14 = arith.constant 0 : index
    %12 = vector.load %arg6[%c0_12, %c0_13, %c0_14] : memref<1x32x32xbf16, #tpu.memory_space<vmem>>, vector<1x32x32xbf16>
    %13 = vector.shape_cast %12 : vector<1x32x32xbf16> to vector<32x32xbf16>
    %cst_15 = arith.constant dense<0.000000e+00> : vector<8x32xf32>
    %14 = tpu.matmul %4, %13, %cst_15 {dimension_numbers = #tpu.dot_dimension_numbers<[1], [1], [0], [0], [0, 0, 1, 0], [], []>} : vector<8x32xbf16>, vector<32x32xbf16>, vector<8x32xf32> -> vector<8x32xf32>
    %15 = arith.addf %11, %14 : vector<8x32xf32>
    %c0_16 = arith.constant 0 : index
    %c0_17 = arith.constant 0 : index
    %16 = vector.load %arg15[%c0_16, %c0_17] : memref<8x32xf32, #tpu.memory_space<vmem>>, vector<8x32xf32>
    tpu.vector_store %arg15[%c0_16, %c0_17], %15 {strides = array<i32>} : memref<8x32xf32, #tpu.memory_space<vmem>>, vector<8x32xf32>,
    %c0_18 = arith.constant 0 : index
    %c0_19 = arith.constant 0 : index
    %17 = vector.load %arg16[%c0_18, %c0_19] : memref<8x32xf32, #tpu.memory_space<vmem>>, vector<8x32xf32>
    %c0_20 = arith.constant 0 : index
    %c0_21 = arith.constant 0 : index
    %c0_22 = arith.constant 0 : index
    %18 = vector.load %arg7[%c0_20, %c0_21, %c0_22] : memref<1x32x32xbf16, #tpu.memory_space<vmem>>, vector<1x32x32xbf16>
    %19 = vector.shape_cast %18 : vector<1x32x32xbf16> to vector<32x32xbf16>
    %cst_23 = arith.constant dense<0.000000e+00> : vector<8x32xf32>
    %20 = tpu.matmul %4, %19, %cst_23 {dimension_numbers = #tpu.dot_dimension_numbers<[1], [1], [0], [0], [0, 0, 1, 0], [], []>} : vector<8x32xbf16>, vector<32x32xbf16>, vector<8x32xf32> -> vector<8x32xf32>
    %21 = arith.addf %17, %20 : vector<8x32xf32>
    %c0_24 = arith.constant 0 : index
    %c0_25 = arith.constant 0 : index
    %22 = vector.load %arg16[%c0_24, %c0_25] : memref<8x32xf32, #tpu.memory_space<vmem>>, vector<8x32xf32>
    tpu.vector_store %arg16[%c0_24, %c0_25], %21 {strides = array<i32>} : memref<8x32xf32, #tpu.memory_space<vmem>>, vector<8x32xf32>,
    %c0_i32_26 = arith.constant 0 : i32
    %23 = arith.cmpi eq, %arg3, %c0_i32_26 : i32
    %24 = arith.extui %23 : i1 to i32
    %c0_i32_27 = arith.constant 0 : i32
    %25 = arith.cmpi ne, %24, %c0_i32_27 : i32
    scf.if %25 {
      %c0_28 = arith.constant 0 : index
      %c0_29 = arith.constant 0 : index
      %26 = vector.load %arg14[%c0_28, %c0_29] : memref<8x32xf32, #tpu.memory_space<vmem>>, vector<8x32xf32>
      %c0_30 = arith.constant 0 : index
      %c0_31 = arith.constant 0 : index
      %27 = vector.load %arg8[%c0_30, %c0_31] : memref<1x32xf32, #tpu.memory_space<vmem>>, vector<1x32xf32>
      %28 = vector.broadcast %27 : vector<1x32xf32> to vector<8x32xf32>
      %29 = arith.addf %26, %28 : vector<8x32xf32>
      %30 = arith.truncf %29 : vector<8x32xf32> to vector<8x32xbf16>
      %c0_32 = arith.constant 0 : index
      %c0_33 = arith.constant 0 : index
      %c0_34 = arith.constant 0 : index
      %31 = vector.load %arg11[%c0_32, %c0_33, %c0_34] : memref<1x8x32xbf16, #tpu.memory_space<vmem>>, vector<1x8x32xbf16>
      %32 = vector.shape_cast %31 : vector<1x8x32xbf16> to vector<8x32xbf16>
      %33 = vector.shape_cast %30 : vector<8x32xbf16> to vector<1x8x32xbf16>
      tpu.vector_store %arg11[%c0_32, %c0_33, %c0_34], %33 {strides = array<i32>} : memref<1x8x32xbf16, #tpu.memory_space<vmem>>, vector<1x8x32xbf16>,
      %c0_35 = arith.constant 0 : index
      %c0_36 = arith.constant 0 : index
      %34 = vector.load %arg15[%c0_35, %c0_36] : memref<8x32xf32, #tpu.memory_space<vmem>>, vector<8x32xf32>
      %c0_37 = arith.constant 0 : index
      %c0_38 = arith.constant 0 : index
      %35 = vector.load %arg9[%c0_37, %c0_38] : memref<1x32xf32, #tpu.memory_space<vmem>>, vector<1x32xf32>
      %36 = vector.broadcast %35 : vector<1x32xf32> to vector<8x32xf32>
      %37 = arith.addf %34, %36 : vector<8x32xf32>
      %38 = arith.truncf %37 : vector<8x32xf32> to vector<8x32xbf16>
      %c0_39 = arith.constant 0 : index
      %c0_40 = arith.constant 0 : index
      %c0_41 = arith.constant 0 : index
      %39 = vector.load %arg12[%c0_39, %c0_40, %c0_41] : memref<1x8x32xbf16, #tpu.memory_space<vmem>>, vector<1x8x32xbf16>
      %40 = vector.shape_cast %39 : vector<1x8x32xbf16> to vector<8x32xbf16>
      %41 = vector.shape_cast %38 : vector<8x32xbf16> to vector<1x8x32xbf16>
      tpu.vector_store %arg12[%c0_39, %c0_40, %c0_41], %41 {strides = array<i32>} : memref<1x8x32xbf16, #tpu.memory_space<vmem>>, vector<1x8x32xbf16>,
      %c0_42 = arith.constant 0 : index
      %c0_43 = arith.constant 0 : index
      %42 = vector.load %arg16[%c0_42, %c0_43] : memref<8x32xf32, #tpu.memory_space<vmem>>, vector<8x32xf32>
      %c0_44 = arith.constant 0 : index
      %c0_45 = arith.constant 0 : index
      %43 = vector.load %arg10[%c0_44, %c0_45] : memref<1x32xf32, #tpu.memory_space<vmem>>, vector<1x32xf32>
      %44 = vector.broadcast %43 : vector<1x32xf32> to vector<8x32xf32>
      %45 = arith.addf %42, %44 : vector<8x32xf32>
      %46 = arith.truncf %45 : vector<8x32xf32> to vector<8x32xbf16>
      %c0_46 = arith.constant 0 : index
      %c0_47 = arith.constant 0 : index
      %c0_48 = arith.constant 0 : index
      %47 = vector.load %arg13[%c0_46, %c0_47, %c0_48] : memref<1x8x32xbf16, #tpu.memory_space<vmem>>, vector<1x8x32xbf16>
      %48 = vector.shape_cast %47 : vector<1x8x32xbf16> to vector<8x32xbf16>
      %49 = vector.shape_cast %46 : vector<8x32xbf16> to vector<1x8x32xbf16>
      tpu.vector_store %arg13[%c0_46, %c0_47, %c0_48], %49 {strides = array<i32>} : memref<1x8x32xbf16, #tpu.memory_space<vmem>>, vector<1x8x32xbf16>,
    } else {
    }
    return
  }
  func.func @transform_0(%arg0: i32, %arg1: i32, %arg2: i32, %arg3: i32) -> (i32, i32, i32) {
    %c0_i32 = arith.constant 0 : i32
    return %arg0, %arg1, %arg3 : i32, i32, i32
  }
  func.func @transform_1(%arg0: i32, %arg1: i32, %arg2: i32, %arg3: i32) -> (i32, i32, i32) {
    %c0_i32 = arith.constant 0 : i32
    return %arg0, %arg2, %arg3 : i32, i32, i32
  }
  func.func @transform_2(%arg0: i32, %arg1: i32, %arg2: i32, %arg3: i32) -> (i32, i32, i32) {
    %c0_i32 = arith.constant 0 : i32
    return %arg0, %arg2, %arg3 : i32, i32, i32
  }
  func.func @transform_3(%arg0: i32, %arg1: i32, %arg2: i32, %arg3: i32) -> (i32, i32, i32) {
    %c0_i32 = arith.constant 0 : i32
    return %arg0, %arg2, %arg3 : i32, i32, i32
  }
  func.func @transform_4(%arg0: i32, %arg1: i32, %arg2: i32, %arg3: i32) -> (i32, i32) {
    %c0_i32 = arith.constant 0 : i32
    %c0_i32_0 = arith.constant 0 : i32
    return %c0_i32, %arg2 : i32, i32
  }
  func.func @transform_5(%arg0: i32, %arg1: i32, %arg2: i32, %arg3: i32) -> (i32, i32) {
    %c0_i32 = arith.constant 0 : i32
    %c0_i32_0 = arith.constant 0 : i32
    return %c0_i32, %arg2 : i32, i32
  }
  func.func @transform_6(%arg0: i32, %arg1: i32, %arg2: i32, %arg3: i32) -> (i32, i32) {
    %c0_i32 = arith.constant 0 : i32
    %c0_i32_0 = arith.constant 0 : i32
    return %c0_i32, %arg2 : i32, i32
  }
  func.func @transform_7(%arg0: i32, %arg1: i32, %arg2: i32, %arg3: i32) -> (i32, i32, i32) {
    %c0_i32 = arith.constant 0 : i32
    return %arg0, %arg1, %arg2 : i32, i32, i32
  }
  func.func @transform_8(%arg0: i32, %arg1: i32, %arg2: i32, %arg3: i32) -> (i32, i32, i32) {
    %c0_i32 = arith.constant 0 : i32
    return %arg0, %arg1, %arg2 : i32, i32, i32
  }
  func.func @transform_9(%arg0: i32, %arg1: i32, %arg2: i32, %arg3: i32) -> (i32, i32, i32) {
    %c0_i32 = arith.constant 0 : i32
    return %arg0, %arg1, %arg2 : i32, i32, i32
  }
}

</mosaic_0001>

<llo_original>
// kernel: tpu_custom_call.1
$region0: #{tpu_custom_call.1}
  #allocation0 [shape = 'u32[]', space=smem, size = 0x4, offset = 0x4, fixed_abs, tag = 'smem constant byte address 0x4 - core index']
  #allocation1 [shape = 'u32[144,128]{1,0:T(1,128)}', space=vmem, size = 0x12000, scoped, tag = 'internal scratch']
  #allocation2 [shape = 'f32[8,32]{1,0:T(8,128)}', space=vmem, size = 0x1000, scoped, tag = 'scratch operand']
  #allocation3 [shape = 'f32[8,32]{1,0:T(8,128)}', space=vmem, size = 0x1000, scoped, tag = 'scratch operand']
  #allocation4 [shape = 'f32[8,32]{1,0:T(8,128)}', space=vmem, size = 0x1000, scoped, tag = 'scratch operand']
  %s0 = inlined_call_operand.hbm [shape: bf16[2,8,32], index: 0, kind: input, shape index: {}]
  %s1 = inlined_call_operand.hbm [shape: bf16[2,32,32], index: 1, kind: input, shape index: {}]
  %s2 = inlined_call_operand.hbm [shape: bf16[2,32,32], index: 2, kind: input, shape index: {}]
  %s3 = inlined_call_operand.hbm [shape: bf16[2,32,32], index: 3, kind: input, shape index: {}]
  %s4 = inlined_call_operand.vmem [shape: f32[1,32], index: 4, kind: input, shape index: {}]
  %s5 = inlined_call_operand.vmem [shape: f32[1,32], index: 5, kind: input, shape index: {}]
  %s6 = inlined_call_operand.vmem [shape: f32[1,32], index: 6, kind: input, shape index: {}]
  %s7 = inlined_call_operand.hbm [shape: bf16[2,8,32], index: 7, kind: output, shape index: {0}]
  %s8 = inlined_call_operand.hbm [shape: bf16[2,8,32], index: 8, kind: output, shape index: {1}]
  %s9 = inlined_call_operand.hbm [shape: bf16[2,8,32], index: 9, kind: output, shape index: {2}]
  %10 = xla_tuple %s7, %s8, %s9
  %s11 = sld [smem:[#allocation0]]
  $region101: #{tpu_custom_call.1} parent=0
    _
  %s13 = ssub.s32 1, %s11
  %s14 = scalar_select 0, %s13, %s11
  $region1: #{tpu_custom_call.1} parent=0
    #allocation5 [shape = 'u8[4096]{0}', space=vmem, size = 0x1000, scoped, tag = 'input window, operand 0']
    #allocation6 [shape = 's32[2]{0}', space=sflag, size = 0x8, scoped, tag = 'scoped memory for tpu_custom_call.1']
    #allocation7 [shape = 's32[2]{0}', space=sflag, size = 0x8, scoped, tag = 'scoped memory for tpu_custom_call.1']
    #allocation8 [shape = 'u8[16384]{0}', space=vmem, size = 0x4000, scoped, tag = 'input window, operand 1']
    #allocation9 [shape = 's32[2]{0}', space=sflag, size = 0x8, scoped, tag = 'scoped memory for tpu_custom_call.1']
    #allocation10 [shape = 'u8[16384]{0}', space=vmem, size = 0x4000, scoped, tag = 'input window, operand 2']
    #allocation11 [shape = 'u8[16384]{0}', space=vmem, size = 0x4000, scoped, tag = 'input window, operand 3']
    #allocation12 [shape = 's32[2]{0}', space=sflag, size = 0x8, scoped, tag = 'scoped memory for tpu_custom_call.1']
    #allocation13 [shape = 'u8[4096]{0}', space=vmem, size = 0x1000, scoped, tag = 'output window, operand 0']
    #allocation14 [shape = 'u8[4096]{0}', space=vmem, size = 0x1000, scoped, tag = 'output window, operand 1']
    #allocation15 [shape = 's32[2]{0}', space=sflag, size = 0x8, scoped, tag = 'scoped memory for tpu_custom_call.1']
    #allocation16 [shape = 'u8[4096]{0}', space=vmem, size = 0x1000, scoped, tag = 'output window, operand 2']
    %15 = vsyncpa [#allocation6], 0
    %s16 = scalar_lea.sflag [#allocation6], 1
    %17 = vsyncpa %s16, 0
    %18 = vsyncpa [#allocation9], 0
    %s19 = scalar_lea.sflag [#allocation9], 1
    %20 = vsyncpa %s19, 0
    %21 = vsyncpa [#allocation12], 0
    %s22 = scalar_lea.sflag [#allocation12], 1
    %23 = vsyncpa %s22, 0
    %24 = vsyncpa [#allocation7], 0
    %s25 = scalar_lea.sflag [#allocation7], 1
    %26 = vsyncpa %s25, 0
    %27 = vsyncpa [#allocation15], 0
    %s28 = scalar_lea.sflag [#allocation15], 1
    %29 = vsyncpa %s28, 0
    loop: start=0, step=1, limit=4
    $region2: #{tpu_custom_call.1} parent=1 // loop_pre_header
      _
    $region3: #{tpu_custom_call.1} parent=1 // loop_header
      %s31 = sphi 0, %s35
      %p32 = scmp.ge.s32.totalorder %s31, 4
      %s38 = sphi 0, %s64
      %s39 = sphi 0, %s60
      %s40 = sphi 0, %s56
      %s41 = sphi 0, %s52
      %s42 = sphi 0, %s38
      %s43 = sphi 0, %s39
      %s44 = sphi 0, %s40
      %s45 = sphi 0, %s41
      %s46 = sphi 0, %s42
      %s47 = sphi 0, %s43
      %s48 = sphi 0, %s44
      %s49 = sphi 0, %s45
      %s71 = sphi 0, %s73
      %s74 = sphi 0, %s71
      %s75 = sphi 0, %s74
      %s91 = sphi 0, %s75
      %s101 = sphi 0, %s103
      %s104 = sphi 0, %s101
      %s105 = sphi 0, %s104
      %s121 = sphi 0, %s105
      %s131 = sphi 0, %s133
      %s134 = sphi 0, %s131
      %s135 = sphi 0, %s134
      %s151 = sphi 0, %s135
      %s161 = sphi 0, %s163
      %s164 = sphi 0, %s161
      %s165 = sphi 0, %s164
      %s181 = sphi 0, %s165
      %s187 = sphi 0, %s189
      %s190 = sphi 0, %s187
      %s191 = sphi 0, %s190
      %s207 = sphi 0, %s191
      %s213 = sphi 0, %s215
      %s216 = sphi 0, %s213
      %s217 = sphi 0, %s216
      %s233 = sphi 0, %s217
      %s239 = sphi 0, %s241
      %s242 = sphi 0, %s239
      %s243 = sphi 0, %s242
      %s259 = sphi 0, %s243
      %s269 = sphi 0, %s271
      %s272 = sphi 0, %s269
      %s273 = sphi 0, %s272
      %s289 = sphi 0, %s273
      %s299 = sphi 0, %s301
      %s302 = sphi 0, %s299
      %s303 = sphi 0, %s302
      %s319 = sphi 0, %s303
      %s329 = sphi 0, %s331
      %s332 = sphi 0, %s329
      %s333 = sphi 0, %s332
      %s349 = sphi 0, %s333
    $region4: #{tpu_custom_call.1} parent=1 // loop_header_branch
      %34 = sbr.rel (%p32) target = $region8
    $region5: #{tpu_custom_call.1} parent=1 // loop_body
      %s36 = ssub.s32 %s31, 1
      %s37 = ssub.s32 %s31, 2
      %s50 = sadd.s32 1, %s41
      %p51 = scmp.ge.s32.totalorder %s50, 1
      %s52 = scalar_select %p51, 0, %s50
      %s53 = sadd.s32 1, %s40
      %s54 = scalar_select %p51, %s53, %s40
      %p55 = scmp.ge.s32.totalorder %s54, 1
      %s56 = scalar_select %p55, 0, %s54
      %s57 = sadd.s32 1, %s39
      %s58 = scalar_select %p55, %s57, %s39
      %p59 = scmp.ge.s32.totalorder %s58, 1
      %s60 = scalar_select %p59, 0, %s58
      %s61 = sadd.s32 1, %s38
      %s62 = scalar_select %p59, %s61, %s38
      %p63 = scmp.ge.s32.totalorder %s62, 2
      %s64 = scalar_select %p63, 0, %s62
      %s65 = ssub.s32 %s38, %s64
      %s66 = ssub.s32 %s39, %s60
      %s67 = sor.u32 %s65, %s66
      %s68 = ssub.s32 %s41, %s52
      %s69 = sor.u32 %s67, %s68
      %p70 = scmp.eq.s32.totalorder %s69, 0
      %s72 = sadd.s32 %s71, 1
      %s73 = scalar_select %p70, %s71, %s72
      %p76 = pneg %p70
      %p77 = scmp.eq.s32.totalorder %s31, 1
      %p78 = por %p76, %p77
      %p79 = scmp.ne.s32.totalorder %s71, %s74
      %p80 = scmp.eq.s32.totalorder %s31, 0
      %p81 = por %p79, %p80
      %p82 = scmp.ne.s32.totalorder %s71, %s74
      %p83 = scmp.eq.s32.totalorder %s36, 1
      %p84 = por %p82, %p83
      %p85 = scmp.ne.s32.totalorder %s74, %s75
      %p86 = scmp.eq.s32.totalorder %s36, 0
      %p87 = por %p85, %p86
      %p88 = scmp.ne.s32.totalorder %s74, %s75
      %p89 = scmp.eq.s32.totalorder %s37, 1
      %p90 = por %p88, %p89
      %p92 = scmp.ne.s32.totalorder %s75, %s91
      %p93 = scmp.eq.s32.totalorder %s37, 0
      %p94 = por %p92, %p93
      %s95 = ssub.s32 %s38, %s64
      %s96 = ssub.s32 %s40, %s56
      %s97 = sor.u32 %s95, %s96
      %s98 = ssub.s32 %s41, %s52
      %s99 = sor.u32 %s97, %s98
      %p100 = scmp.eq.s32.totalorder %s99, 0
      %s102 = sadd.s32 %s101, 1
      %s103 = scalar_select %p100, %s101, %s102
      %p106 = pneg %p100
      %p107 = scmp.eq.s32.totalorder %s31, 1
      %p108 = por %p106, %p107
      %p109 = scmp.ne.s32.totalorder %s101, %s104
      %p110 = scmp.eq.s32.totalorder %s31, 0
      %p111 = por %p109, %p110
      %p112 = scmp.ne.s32.totalorder %s101, %s104
      %p113 = scmp.eq.s32.totalorder %s36, 1
      %p114 = por %p112, %p113
      %p115 = scmp.ne.s32.totalorder %s104, %s105
      %p116 = scmp.eq.s32.totalorder %s36, 0
      %p117 = por %p115, %p116
      %p118 = scmp.ne.s32.totalorder %s104, %s105
      %p119 = scmp.eq.s32.totalorder %s37, 1
      %p120 = por %p118, %p119
      %p122 = scmp.ne.s32.totalorder %s105, %s121
      %p123 = scmp.eq.s32.totalorder %s37, 0
      %p124 = por %p122, %p123
      %s125 = ssub.s32 %s38, %s64
      %s126 = ssub.s32 %s40, %s56
      %s127 = sor.u32 %s125, %s126
      %s128 = ssub.s32 %s41, %s52
      %s129 = sor.u32 %s127, %s128
      %p130 = scmp.eq.s32.totalorder %s129, 0
      %s132 = sadd.s32 %s131, 1
      %s133 = scalar_select %p130, %s131, %s132
      %p136 = pneg %p130
      %p137 = scmp.eq.s32.totalorder %s31, 1
      %p138 = por %p136, %p137
      %p139 = scmp.ne.s32.totalorder %s131, %s134
      %p140 = scmp.eq.s32.totalorder %s31, 0
      %p141 = por %p139, %p140
      %p142 = scmp.ne.s32.totalorder %s131, %s134
      %p143 = scmp.eq.s32.totalorder %s36, 1
      %p144 = por %p142, %p143
      %p145 = scmp.ne.s32.totalorder %s134, %s135
      %p146 = scmp.eq.s32.totalorder %s36, 0
      %p147 = por %p145, %p146
      %p148 = scmp.ne.s32.totalorder %s134, %s135
      %p149 = scmp.eq.s32.totalorder %s37, 1
      %p150 = por %p148, %p149
      %p152 = scmp.ne.s32.totalorder %s135, %s151
      %p153 = scmp.eq.s32.totalorder %s37, 0
      %p154 = por %p152, %p153
      %s155 = ssub.s32 %s38, %s64
      %s156 = ssub.s32 %s40, %s56
      %s157 = sor.u32 %s155, %s156
      %s158 = ssub.s32 %s41, %s52
      %s159 = sor.u32 %s157, %s158
      %p160 = scmp.eq.s32.totalorder %s159, 0
      %s162 = sadd.s32 %s161, 1
      %s163 = scalar_select %p160, %s161, %s162
      %p166 = pneg %p160
      %p167 = scmp.eq.s32.totalorder %s31, 1
      %p168 = por %p166, %p167
      %p169 = scmp.ne.s32.totalorder %s161, %s164
      %p170 = scmp.eq.s32.totalorder %s31, 0
      %p171 = por %p169, %p170
      %p172 = scmp.ne.s32.totalorder %s161, %s164
      %p173 = scmp.eq.s32.totalorder %s36, 1
      %p174 = por %p172, %p173
      %p175 = scmp.ne.s32.totalorder %s164, %s165
      %p176 = scmp.eq.s32.totalorder %s36, 0
      %p177 = por %p175, %p176
      %p178 = scmp.ne.s32.totalorder %s164, %s165
      %p179 = scmp.eq.s32.totalorder %s37, 1
      %p180 = por %p178, %p179
      %p182 = scmp.ne.s32.totalorder %s165, %s181
      %p183 = scmp.eq.s32.totalorder %s37, 0
      %p184 = por %p182, %p183
      %s185 = ssub.s32 %s40, %s56
      %p186 = scmp.eq.s32.totalorder %s185, 0
      %s188 = sadd.s32 %s187, 1
      %s189 = scalar_select %p186, %s187, %s188
      %p192 = pneg %p186
      %p193 = scmp.eq.s32.totalorder %s31, 1
      %p194 = por %p192, %p193
      %p195 = scmp.ne.s32.totalorder %s187, %s190
      %p196 = scmp.eq.s32.totalorder %s31, 0
      %p197 = por %p195, %p196
      %p198 = scmp.ne.s32.totalorder %s187, %s190
      %p199 = scmp.eq.s32.totalorder %s36, 1
      %p200 = por %p198, %p199
      %p201 = scmp.ne.s32.totalorder %s190, %s191
      %p202 = scmp.eq.s32.totalorder %s36, 0
      %p203 = por %p201, %p202
      %p204 = scmp.ne.s32.totalorder %s190, %s191
      %p205 = scmp.eq.s32.totalorder %s37, 1
      %p206 = por %p204, %p205
      %p208 = scmp.ne.s32.totalorder %s191, %s207
      %p209 = scmp.eq.s32.totalorder %s37, 0
      %p210 = por %p208, %p209
      %s211 = ssub.s32 %s40, %s56
      %p212 = scmp.eq.s32.totalorder %s211, 0
      %s214 = sadd.s32 %s213, 1
      %s215 = scalar_select %p212, %s213, %s214
      %p218 = pneg %p212
      %p219 = scmp.eq.s32.totalorder %s31, 1
      %p220 = por %p218, %p219
      %p221 = scmp.ne.s32.totalorder %s213, %s216
      %p222 = scmp.eq.s32.totalorder %s31, 0
      %p223 = por %p221, %p222
      %p224 = scmp.ne.s32.totalorder %s213, %s216
      %p225 = scmp.eq.s32.totalorder %s36, 1
      %p226 = por %p224, %p225
      %p227 = scmp.ne.s32.totalorder %s216, %s217
      %p228 = scmp.eq.s32.totalorder %s36, 0
      %p229 = por %p227, %p228
      %p230 = scmp.ne.s32.totalorder %s216, %s217
      %p231 = scmp.eq.s32.totalorder %s37, 1
      %p232 = por %p230, %p231
      %p234 = scmp.ne.s32.totalorder %s217, %s233
      %p235 = scmp.eq.s32.totalorder %s37, 0
      %p236 = por %p234, %p235
      %s237 = ssub.s32 %s40, %s56
      %p238 = scmp.eq.s32.totalorder %s237, 0
      %s240 = sadd.s32 %s239, 1
      %s241 = scalar_select %p238, %s239, %s240
      %p244 = pneg %p238
      %p245 = scmp.eq.s32.totalorder %s31, 1
      %p246 = por %p244, %p245
      %p247 = scmp.ne.s32.totalorder %s239, %s242
      %p248 = scmp.eq.s32.totalorder %s31, 0
      %p249 = por %p247, %p248
      %p250 = scmp.ne.s32.totalorder %s239, %s242
      %p251 = scmp.eq.s32.totalorder %s36, 1
      %p252 = por %p250, %p251
      %p253 = scmp.ne.s32.totalorder %s242, %s243
      %p254 = scmp.eq.s32.totalorder %s36, 0
      %p255 = por %p253, %p254
      %p256 = scmp.ne.s32.totalorder %s242, %s243
      %p257 = scmp.eq.s32.totalorder %s37, 1
      %p258 = por %p256, %p257
      %p260 = scmp.ne.s32.totalorder %s243, %s259
      %p261 = scmp.eq.s32.totalorder %s37, 0
      %p262 = por %p260, %p261
      %s263 = ssub.s32 %s38, %s64
      %s264 = ssub.s32 %s39, %s60
      %s265 = sor.u32 %s263, %s264
      %s266 = ssub.s32 %s40, %s56
      %s267 = sor.u32 %s265, %s266
      %p268 = scmp.eq.s32.totalorder %s267, 0
      %s270 = sadd.s32 %s269, 1
      %s271 = scalar_select %p268, %s269, %s270
      %p274 = pneg %p268
      %p275 = scmp.eq.s32.totalorder %s31, 1
      %p276 = por %p274, %p275
      %p277 = scmp.ne.s32.totalorder %s269, %s272
      %p278 = scmp.eq.s32.totalorder %s31, 0
      %p279 = por %p277, %p278
      %p280 = scmp.ne.s32.totalorder %s269, %s272
      %p281 = scmp.eq.s32.totalorder %s36, 1
      %p282 = por %p280, %p281
      %p283 = scmp.ne.s32.totalorder %s272, %s273
      %p284 = scmp.eq.s32.totalorder %s36, 0
      %p285 = por %p283, %p284
      %p286 = scmp.ne.s32.totalorder %s272, %s273
      %p287 = scmp.eq.s32.totalorder %s37, 1
      %p288 = por %p286, %p287
      %p290 = scmp.ne.s32.totalorder %s273, %s289
      %p291 = scmp.eq.s32.totalorder %s37, 0
      %p292 = por %p290, %p291
      %s293 = ssub.s32 %s38, %s64
      %s294 = ssub.s32 %s39, %s60
      %s295 = sor.u32 %s293, %s294
      %s296 = ssub.s32 %s40, %s56
      %s297 = sor.u32 %s295, %s296
      %p298 = scmp.eq.s32.totalorder %s297, 0
      %s300 = sadd.s32 %s299, 1
      %s301 = scalar_select %p298, %s299, %s300
      %p304 = pneg %p298
      %p305 = scmp.eq.s32.totalorder %s31, 1
      %p306 = por %p304, %p305
      %p307 = scmp.ne.s32.totalorder %s299, %s302
      %p308 = scmp.eq.s32.totalorder %s31, 0
      %p309 = por %p307, %p308
      %p310 = scmp.ne.s32.totalorder %s299, %s302
      %p311 = scmp.eq.s32.totalorder %s36, 1
      %p312 = por %p310, %p311
      %p313 = scmp.ne.s32.totalorder %s302, %s303
      %p314 = scmp.eq.s32.totalorder %s36, 0
      %p315 = por %p313, %p314
      %p316 = scmp.ne.s32.totalorder %s302, %s303
      %p317 = scmp.eq.s32.totalorder %s37, 1
      %p318 = por %p316, %p317
      %p320 = scmp.ne.s32.totalorder %s303, %s319
      %p321 = scmp.eq.s32.totalorder %s37, 0
      %p322 = por %p320, %p321
      %s323 = ssub.s32 %s38, %s64
      %s324 = ssub.s32 %s39, %s60
      %s325 = sor.u32 %s323, %s324
      %s326 = ssub.s32 %s40, %s56
      %s327 = sor.u32 %s325, %s326
      %p328 = scmp.eq.s32.totalorder %s327, 0
      %s330 = sadd.s32 %s329, 1
      %s331 = scalar_select %p328, %s329, %s330
      %p334 = pneg %p328
      %p335 = scmp.eq.s32.totalorder %s31, 1
      %p336 = por %p334, %p335
      %p337 = scmp.ne.s32.totalorder %s329, %s332
      %p338 = scmp.eq.s32.totalorder %s31, 0
      %p339 = por %p337, %p338
      %p340 = scmp.ne.s32.totalorder %s329, %s332
      %p341 = scmp.eq.s32.totalorder %s36, 1
      %p342 = por %p340, %p341
      %p343 = scmp.ne.s32.totalorder %s332, %s333
      %p344 = scmp.eq.s32.totalorder %s36, 0
      %p345 = por %p343, %p344
      %p346 = scmp.ne.s32.totalorder %s332, %s333
      %p347 = scmp.eq.s32.totalorder %s37, 1
      %p348 = por %p346, %p347
      %p350 = scmp.ne.s32.totalorder %s333, %s349
      %p351 = scmp.eq.s32.totalorder %s37, 0
      %p352 = por %p350, %p351
      %p353 = scmp.le.s32.totalorder 1, %s31
      %p354 = scmp.lt.s32.totalorder %s31, 3
      %p355 = pnand %p353, %p354
      %p356 = pneg %p355
      // Predicated region
      $region9: #{tpu_custom_call.1} parent=5 // pred_check
        _
      $region10: #{tpu_custom_call.1} parent=5 // pred_check_branch
        %358 = sbr.rel (%p355) target = $region12
      $region11: #{tpu_custom_call.1} parent=5 // pred_region
        %s359 = ssub.s32 %s31, 1
        // Predicated region
        $region13: #{tpu_custom_call.1} parent=11 // pred_check
          %p360 = pneg %p203
        $region14: #{tpu_custom_call.1} parent=11 // pred_check_branch
          %362 = sbr.rel (%p360) target = $region16
        $region15: #{tpu_custom_call.1} parent=11 // pred_region
          %p363 = scmp.lt.s32.totalorder %s44, 0
          %s364 = scalar_select %p363, %s44, 0
          %s365 = scalar_lea.vmem %s4, %s364
        $region16: #{tpu_custom_call.1} parent=11 // pred_fallthru
          _
        // Predicated region
        $region17: #{tpu_custom_call.1} parent=11 // pred_check
          %p366 = pneg %p229
        $region18: #{tpu_custom_call.1} parent=11 // pred_check_branch
          %368 = sbr.rel (%p366) target = $region20
        $region19: #{tpu_custom_call.1} parent=11 // pred_region
          %p369 = scmp.lt.s32.totalorder %s44, 0
          %s370 = scalar_select %p369, %s44, 0
          %s371 = scalar_lea.vmem %s5, %s370
        $region20: #{tpu_custom_call.1} parent=11 // pred_fallthru
          _
        // Predicated region
        $region21: #{tpu_custom_call.1} parent=11 // pred_check
          %p372 = pneg %p255
        $region22: #{tpu_custom_call.1} parent=11 // pred_check_branch
          %374 = sbr.rel (%p372) target = $region24
        $region23: #{tpu_custom_call.1} parent=11 // pred_region
          %p375 = scmp.lt.s32.totalorder %s44, 0
          %s376 = scalar_select %p375, %s44, 0
          %s377 = scalar_lea.vmem %s6, %s376
        $region24: #{tpu_custom_call.1} parent=11 // pred_fallthru
          _
      $region12: #{tpu_custom_call.1} parent=5 // pred_fallthru
        _
      %p378 = scmp.lt.s32.totalorder %s31, 2
      // Predicated region
      $region25: #{tpu_custom_call.1} parent=5 // pred_check
        %p379 = pneg %p378
      $region26: #{tpu_custom_call.1} parent=5 // pred_check_branch
        %381 = sbr.rel (%p379) target = $region28
      $region27: #{tpu_custom_call.1} parent=5 // pred_region
        // Predicated region
        $region29: #{tpu_custom_call.1} parent=27 // pred_check
          %p382 = pneg %p81
        $region30: #{tpu_custom_call.1} parent=27 // pred_check_branch
          %384 = sbr.rel (%p382) target = $region32
        $region31: #{tpu_custom_call.1} parent=27 // pred_region
          %s385 = sand.u32 %s71, 1
          %s386 = scalar_lea.sflag [#allocation6], %s385
          %s387 = sand.u32 %s71, 1
          %s388 = smul.addr %s387, 4
          %s389 = scalar_lea.vmem [#allocation5], %s388
          %s391 = ssub.s32 64, 64
          %392 = vsyncadd %s386, %s391
          %s393 = sadd.s32 %s41, %s39
          %s394 = sadd.s32 %s393, %s38
          %s395 = smul.addr %s394, 64
          %s396 = scalar_lea.hbm %s0, %s395
          %s398 = sshll.u32 %s389, 4
          %s399 = int_to_ptr.vmem [resolvable:$true] %s398
          %401 = dma.hbm_to_vmem [thread:$0]  %s396, 64, %s399, %s386
        $region32: #{tpu_custom_call.1} parent=27 // pred_fallthru
          _
        // Predicated region
        $region33: #{tpu_custom_call.1} parent=27 // pred_check
          %p402 = pneg %p111
        $region34: #{tpu_custom_call.1} parent=27 // pred_check_branch
          %404 = sbr.rel (%p402) target = $region36
        $region35: #{tpu_custom_call.1} parent=27 // pred_region
          %s405 = sand.u32 %s31, 1
          %s406 = scalar_lea.sflag [#allocation9], %s405
          %s407 = sand.u32 %s101, 1
          %s408 = smul.addr %s407, 16
          %s409 = scalar_lea.vmem [#allocation8], %s408
          %s410 = smul.u32 4, %s40
          %s412 = ssub.s32 256, 256
          %413 = vsyncadd %s406, %s412
          %s414 = sadd.s32 %s41, %s410
          %s415 = smul.addr %s38, 4
          %s416 = sadd.s32 %s414, %s415
          %s417 = smul.addr %s416, 64
          %s418 = scalar_lea.hbm %s1, %s417
          %s419 = sshll.u32 %s409, 4
          %s420 = int_to_ptr.vmem [resolvable:$true] %s419
          %425 = dma.hbm_to_vmem [thread:$0]  %s418, 256, %s420, %s406, 64, 64, 4
        $region36: #{tpu_custom_call.1} parent=27 // pred_fallthru
          _
        // Predicated region
        $region37: #{tpu_custom_call.1} parent=27 // pred_check
          %p426 = pneg %p141
        $region38: #{tpu_custom_call.1} parent=27 // pred_check_branch
          %428 = sbr.rel (%p426) target = $region40
        $region39: #{tpu_custom_call.1} parent=27 // pred_region
          %s429 = sand.u32 %s31, 1
          %s430 = scalar_lea.sflag [#allocation9], %s429
          %s431 = sand.u32 %s131, 1
          %s432 = smul.addr %s431, 16
          %s433 = scalar_lea.vmem [#allocation10], %s432
          %s434 = smul.u32 4, %s40
          %s436 = ssub.s32 256, 256
          %437 = vsyncadd %s430, %s436
          %s438 = sadd.s32 %s41, %s434
          %s439 = smul.addr %s38, 4
          %s440 = sadd.s32 %s438, %s439
          %s441 = smul.addr %s440, 64
          %s442 = scalar_lea.hbm %s2, %s441
          %s443 = sshll.u32 %s433, 4
          %s444 = int_to_ptr.vmem [resolvable:$true] %s443
          %449 = dma.hbm_to_vmem [thread:$0]  %s442, 256, %s444, %s430, 64, 64, 4
        $region40: #{tpu_custom_call.1} parent=27 // pred_fallthru
          _
        // Predicated region
        $region41: #{tpu_custom_call.1} parent=27 // pred_check
          %p450 = pneg %p171
        $region42: #{tpu_custom_call.1} parent=27 // pred_check_branch
          %452 = sbr.rel (%p450) target = $region44
        $region43: #{tpu_custom_call.1} parent=27 // pred_region
          %s453 = sand.u32 %s161, 1
          %s454 = scalar_lea.sflag [#allocation12], %s453
          %s455 = sand.u32 %s161, 1
          %s456 = smul.addr %s455, 16
          %s457 = scalar_lea.vmem [#allocation11], %s456
          %s458 = smul.u32 4, %s40
          %s460 = ssub.s32 256, 256
          %461 = vsyncadd %s454, %s460
          %s462 = sadd.s32 %s41, %s458
          %s463 = smul.addr %s38, 4
          %s464 = sadd.s32 %s462, %s463
          %s465 = smul.addr %s464, 64
          %s466 = scalar_lea.hbm %s3, %s465
          %s467 = sshll.u32 %s457, 4
          %s468 = int_to_ptr.vmem [resolvable:$true] %s467
          %473 = dma.hbm_to_vmem [thread:$0]  %s466, 256, %s468, %s454, 64, 64, 4
        $region44: #{tpu_custom_call.1} parent=27 // pred_fallthru
          _
      $region28: #{tpu_custom_call.1} parent=5 // pred_fallthru
        _
      %p474 = scmp.le.s32.totalorder 1, %s31
      %p475 = scmp.lt.s32.totalorder %s31, 3
      %p476 = pnand %p474, %p475
      %p477 = pneg %p476
      // Predicated region
      $region45: #{tpu_custom_call.1} parent=5 // pred_check
        _
      $region46: #{tpu_custom_call.1} parent=5 // pred_check_branch
        %479 = sbr.rel (%p476) target = $region48
      $region47: #{tpu_custom_call.1} parent=5 // pred_region
        %s480 = ssub.s32 %s31, 1
        %s481 = sand.u32 %s74, 1
        %s482 = scalar_lea.sflag [#allocation6], %s481
        %s483 = sand.u32 %s74, 1
        %s484 = smul.addr %s483, 4
        %s485 = scalar_lea.vmem [#allocation5], %s484
        // Predicated region
        $region49: #{tpu_custom_call.1} parent=47 // pred_check
          %p486 = pneg %p87
        $region50: #{tpu_custom_call.1} parent=47 // pred_check_branch
          %488 = sbr.rel (%p486) target = $region52
        $region51: #{tpu_custom_call.1} parent=47 // pred_region
          %489 = dma.done %s482, 64
        $region52: #{tpu_custom_call.1} parent=47 // pred_fallthru
          _
        %s490 = sand.u32 %s36, 1
        %s491 = scalar_lea.sflag [#allocation9], %s490
        %s492 = sand.u32 %s104, 1
        %s493 = smul.addr %s492, 16
        %s494 = scalar_lea.vmem [#allocation8], %s493
        // Predicated region
        $region53: #{tpu_custom_call.1} parent=47 // pred_check
          %p495 = pneg %p117
        $region54: #{tpu_custom_call.1} parent=47 // pred_check_branch
          %497 = sbr.rel (%p495) target = $region56
        $region55: #{tpu_custom_call.1} parent=47 // pred_region
          %498 = dma.done %s491, 256
        $region56: #{tpu_custom_call.1} parent=47 // pred_fallthru
          _
        %s499 = sand.u32 %s36, 1
        %s500 = scalar_lea.sflag [#allocation9], %s499
        %s501 = sand.u32 %s134, 1
        %s502 = smul.addr %s501, 16
        %s503 = scalar_lea.vmem [#allocation10], %s502
        // Predicated region
        $region57: #{tpu_custom_call.1} parent=47 // pred_check
          %p504 = pneg %p147
        $region58: #{tpu_custom_call.1} parent=47 // pred_check_branch
          %506 = sbr.rel (%p504) target = $region60
        $region59: #{tpu_custom_call.1} parent=47 // pred_region
          %507 = dma.done %s500, 256
        $region60: #{tpu_custom_call.1} parent=47 // pred_fallthru
          _
        %s508 = sand.u32 %s164, 1
        %s509 = scalar_lea.sflag [#allocation12], %s508
        %s510 = sand.u32 %s164, 1
        %s511 = smul.addr %s510, 16
        %s512 = scalar_lea.vmem [#allocation11], %s511
        // Predicated region
        $region61: #{tpu_custom_call.1} parent=47 // pred_check
          %p513 = pneg %p177
        $region62: #{tpu_custom_call.1} parent=47 // pred_check_branch
          %515 = sbr.rel (%p513) target = $region64
        $region63: #{tpu_custom_call.1} parent=47 // pred_region
          %516 = dma.done %s509, 256
        $region64: #{tpu_custom_call.1} parent=47 // pred_fallthru
          _
        %s517 = sand.u32 %s74, 1
        %s518 = scalar_lea.sflag [#allocation6], %s517
        %s519 = sand.u32 %s74, 1
        %s520 = smul.addr %s519, 4
        %s521 = scalar_lea.vmem [#allocation5], %s520
        %p522 = pneg %p87
        %p523 = pneg %p84
        %s524 = sand.u32 %s36, 1
        %s525 = scalar_lea.sflag [#allocation9], %s524
        %s526 = sand.u32 %s104, 1
        %s527 = smul.addr %s526, 16
        %s528 = scalar_lea.vmem [#allocation8], %s527
        %p529 = pneg %p117
        %p530 = pneg %p114
        %s531 = sand.u32 %s36, 1
        %s532 = scalar_lea.sflag [#allocation9], %s531
        %s533 = sand.u32 %s134, 1
        %s534 = smul.addr %s533, 16
        %s535 = scalar_lea.vmem [#allocation10], %s534
        %p536 = pneg %p147
        %p537 = pneg %p144
        %s538 = sand.u32 %s164, 1
        %s539 = scalar_lea.sflag [#allocation12], %s538
        %s540 = sand.u32 %s164, 1
        %s541 = smul.addr %s540, 16
        %s542 = scalar_lea.vmem [#allocation11], %s541
        %p543 = pneg %p177
        %p544 = pneg %p174
        %p545 = scmp.lt.s32.totalorder %s44, 0
        %s546 = scalar_select %p545, %s44, 0
        %s547 = scalar_lea.vmem %s4, %s546
        %p548 = pneg %p203
        %p549 = pneg %p200
        %p550 = scmp.lt.s32.totalorder %s44, 0
        %s551 = scalar_select %p550, %s44, 0
        %s552 = scalar_lea.vmem %s5, %s551
        %p553 = pneg %p229
        %p554 = pneg %p226
        %p555 = scmp.lt.s32.totalorder %s44, 0
        %s556 = scalar_select %p555, %s44, 0
        %s557 = scalar_lea.vmem %s6, %s556
        %p558 = pneg %p255
        %p559 = pneg %p252
        %p560 = pneg %p285
        %p561 = pneg %p282
        %s562 = sand.u32 %s272, 1
        %s563 = scalar_lea.sflag [#allocation7], %s562
        %s564 = sand.u32 %s272, 1
        %s565 = smul.addr %s564, 4
        %s566 = scalar_lea.vmem [#allocation13], %s565
        %p567 = pneg %p315
        %p568 = pneg %p312
        %s569 = sand.u32 %s36, 1
        %s570 = scalar_lea.sflag [#allocation15], %s569
        %s571 = sand.u32 %s302, 1
        %s572 = smul.addr %s571, 4
        %s573 = scalar_lea.vmem [#allocation14], %s572
        %p574 = pneg %p345
        %p575 = pneg %p342
        %s576 = sand.u32 %s36, 1
        %s577 = scalar_lea.sflag [#allocation15], %s576
        %s578 = sand.u32 %s332, 1
        %s579 = smul.addr %s578, 4
        %s580 = scalar_lea.vmem [#allocation16], %s579
        %s581 = smul.u32 4, %s44
        %s582 = smul.u32 4, %s44
        %s583 = smul.u32 4, %s44
        %p584 = scmp.lt.s32.totalorder %s44, 0
        %s585 = scalar_select %p584, %s44, 0
        %s586 = scalar_lea.vmem %s4, %s585
        %p587 = scmp.lt.s32.totalorder %s44, 0
        %s588 = scalar_select %p587, %s44, 0
        %s589 = scalar_lea.vmem %s5, %s588
        %p590 = scmp.lt.s32.totalorder %s44, 0
        %s591 = scalar_select %p590, %s44, 0
        %s592 = scalar_lea.vmem %s6, %s591
        %p594 = scmp.eq.s32.totalorder %s45, 0
        // Predicated region
        $region65: #{tpu_custom_call.1} parent=47 // pred_check
          %p595 = pneg %p594
        $region66: #{tpu_custom_call.1} parent=47 // pred_check_branch
          %597 = sbr.rel (%p595) target = $region68
        $region67: #{tpu_custom_call.1} parent=47 // pred_region
          %vm598 = vcmask 261120
          %599 = vst.msk [vmem:[#allocation2] sm:$0xff] %vm598, 0.0
          %600 = vst.msk [vmem:[#allocation3] sm:$0xff] %vm598, 0.0
          %601 = vst.msk [vmem:[#allocation4] sm:$0xff] %vm598, 0.0
        $region68: #{tpu_custom_call.1} parent=47 // pred_fallthru
          _
        %v602 = vld [vmem:[%s485] sm:$0xf]
        %v603 = vld [vmem:[#allocation2] sm:$0xff]
        %v604 = vld [vmem:[%s494] sm:$0xf]
        %v605 = vld [vmem:[%s494 + $0x4] sm:$0xf]
        %v606 = vld [vmem:[%s494 + $0x8] sm:$0xf]
        %v607 = vld [vmem:[%s494 + $0xc] sm:$0xf]
        %v612 = vunpack.c.l.b16 %v604
        %v613 = vunpack.c.l.b16 %v605
        %v614 = vunpack.c.l.b16 %v606
        %v615 = vunpack.c.l.b16 %v607
        %v616 = vpack.c.b16 %v613, %v612
        %v617 = vpack.c.b16 %v615, %v614
        %vm618 = vcmask 261120
        %v620 = vsel %vm618, %v602, 0
        %v623 = vsel %vm618, %v616, 0
        %v626 = vsel %vm618, %v617, 0
        %628 = vmatprep.subr.bf16.mxu0 0
        %629 = vmatpush1.bf16.xpose.msra.mxu0 %v623
        %630 = vmatprep.subr.bf16.mxu0 0
        %631 = vmatpush1.bf16.xpose.msra.mxu0 %v626
        %632 = vmatprep.subr.bf16.mxu0 0
        %633 = vmatpush1.bf16.xpose.msra.mxu0 0
        %634 = vmatprep.subr.bf16.mxu0 0
        %635 = vmatpush1.bf16.xpose.msra.mxu0 0
        %636 = vmatprep.subr.bf16.mxu0 0
        %637 = vmatpush1.bf16.xpose.msra.mxu0 0
        %638 = vmatprep.subr.bf16.mxu0 0
        %639 = vmatpush1.bf16.xpose.msra.mxu0 0
        %640 = vmatprep.subr.bf16.mxu0 0
        %641 = vmatpush1.bf16.xpose.msra.mxu0 0
        %642 = vmatprep.subr.bf16.mxu0 0
        %643 = vmatpush1.bf16.xpose.msra.mxu0 0
        %644 = vmatprep.subr.bf16.mxu0 0
        %645 = vmatpush1.bf16.xpose.msra.mxu0 0
        %646 = vmatprep.subr.bf16.mxu0 0
        %647 = vmatpush1.bf16.xpose.msra.mxu0 0
        %648 = vmatprep.subr.bf16.mxu0 0
        %649 = vmatpush1.bf16.xpose.msra.mxu0 0
        %650 = vmatprep.subr.bf16.mxu0 0
        %651 = vmatpush1.bf16.xpose.msra.mxu0 0
        %652 = vmatprep.subr.bf16.mxu0 0
        %653 = vmatpush1.bf16.xpose.msra.mxu0 0
        %654 = vmatprep.subr.bf16.mxu0 0
        %655 = vmatpush1.bf16.xpose.msra.mxu0 0
        %656 = vmatprep.subr.bf16.mxu0 0
        %657 = vmatpush1.bf16.xpose.msra.mxu0 0
        %658 = vmatprep.subr.bf16.mxu0 0
        %659 = vmatpush1.bf16.xpose.msra.mxu0 0
        %660 = vmatprep.mubr.bf16.mxu0 0
        %661 = vmatmul.mubr.bf16.gmra.mrb[0].mxu0 %v620
        %v662 = vpop.f32.mrb[0].mxu0
        %v663 = vadd.f32 0.0, %v662
        %v664 = vpop.f32.mrb[0].mxu0
        %v665 = vpop.f32.mrb[0].mxu0
        %v666 = vpop.f32.mrb[0].mxu0
        %667 = vdwg.mxu0
        %v668 = vadd.f32 %v603, %v663
        %669 = vst.msk [vmem:[#allocation2] sm:$0xff] %vm618, %v668
        %v670 = vld [vmem:[#allocation3] sm:$0xff]
        %v671 = vld [vmem:[%s503] sm:$0xf]
        %v672 = vld [vmem:[%s503 + $0x4] sm:$0xf]
        %v673 = vld [vmem:[%s503 + $0x8] sm:$0xf]
        %v674 = vld [vmem:[%s503 + $0xc] sm:$0xf]
        %v679 = vunpack.c.l.b16 %v671
        %v680 = vunpack.c.l.b16 %v672
        %v681 = vunpack.c.l.b16 %v673
        %v682 = vunpack.c.l.b16 %v674
        %v683 = vpack.c.b16 %v680, %v679
        %v684 = vpack.c.b16 %v682, %v681
        %v686 = vsel %vm618, %v683, 0
        %v689 = vsel %vm618, %v684, 0
        %691 = vmatprep.subr.bf16.mxu0 0
        %692 = vmatpush1.bf16.xpose.msra.mxu0 %v686
        %693 = vmatprep.subr.bf16.mxu0 0
        %694 = vmatpush1.bf16.xpose.msra.mxu0 %v689
        %695 = vmatprep.subr.bf16.mxu0 0
        %696 = vmatpush1.bf16.xpose.msra.mxu0 0
        %697 = vmatprep.subr.bf16.mxu0 0
        %698 = vmatpush1.bf16.xpose.msra.mxu0 0
        %699 = vmatprep.subr.bf16.mxu0 0
        %700 = vmatpush1.bf16.xpose.msra.mxu0 0
        %701 = vmatprep.subr.bf16.mxu0 0
        %702 = vmatpush1.bf16.xpose.msra.mxu0 0
        %703 = vmatprep.subr.bf16.mxu0 0
        %704 = vmatpush1.bf16.xpose.msra.mxu0 0
        %705 = vmatprep.subr.bf16.mxu0 0
        %706 = vmatpush1.bf16.xpose.msra.mxu0 0
        %707 = vmatprep.subr.bf16.mxu0 0
        %708 = vmatpush1.bf16.xpose.msra.mxu0 0
        %709 = vmatprep.subr.bf16.mxu0 0
        %710 = vmatpush1.bf16.xpose.msra.mxu0 0
        %711 = vmatprep.subr.bf16.mxu0 0
        %712 = vmatpush1.bf16.xpose.msra.mxu0 0
        %713 = vmatprep.subr.bf16.mxu0 0
        %714 = vmatpush1.bf16.xpose.msra.mxu0 0
        %715 = vmatprep.subr.bf16.mxu0 0
        %716 = vmatpush1.bf16.xpose.msra.mxu0 0
        %717 = vmatprep.subr.bf16.mxu0 0
        %718 = vmatpush1.bf16.xpose.msra.mxu0 0
        %719 = vmatprep.subr.bf16.mxu0 0
        %720 = vmatpush1.bf16.xpose.msra.mxu0 0
        %721 = vmatprep.subr.bf16.mxu0 0
        %722 = vmatpush1.bf16.xpose.msra.mxu0 0
        %723 = vmatprep.mubr.bf16.mxu0 0
        %724 = vmatmul.mubr.bf16.gmra.mrb[0].mxu0 %v620
        %v725 = vpop.f32.mrb[0].mxu0
        %v726 = vadd.f32 0.0, %v725
        %v727 = vpop.f32.mrb[0].mxu0
        %v728 = vpop.f32.mrb[0].mxu0
        %v729 = vpop.f32.mrb[0].mxu0
        %730 = vdwg.mxu0
        %v731 = vadd.f32 %v670, %v726
        %732 = vst.msk [vmem:[#allocation3] sm:$0xff] %vm618, %v731
        %v733 = vld [vmem:[#allocation4] sm:$0xff]
        %v734 = vld [vmem:[%s512] sm:$0xf]
        %v735 = vld [vmem:[%s512 + $0x4] sm:$0xf]
        %v736 = vld [vmem:[%s512 + $0x8] sm:$0xf]
        %v737 = vld [vmem:[%s512 + $0xc] sm:$0xf]
        %v742 = vunpack.c.l.b16 %v734
        %v743 = vunpack.c.l.b16 %v735
        %v744 = vunpack.c.l.b16 %v736
        %v745 = vunpack.c.l.b16 %v737
        %v746 = vpack.c.b16 %v743, %v742
        %v747 = vpack.c.b16 %v745, %v744
        %v749 = vsel %vm618, %v746, 0
        %v752 = vsel %vm618, %v747, 0
        %754 = vmatprep.subr.bf16.mxu0 0
        %755 = vmatpush1.bf16.xpose.msra.mxu0 %v749
        %756 = vmatprep.subr.bf16.mxu0 0
        %757 = vmatpush1.bf16.xpose.msra.mxu0 %v752
        %758 = vmatprep.subr.bf16.mxu0 0
        %759 = vmatpush1.bf16.xpose.msra.mxu0 0
        %760 = vmatprep.subr.bf16.mxu0 0
        %761 = vmatpush1.bf16.xpose.msra.mxu0 0
        %762 = vmatprep.subr.bf16.mxu0 0
        %763 = vmatpush1.bf16.xpose.msra.mxu0 0
        %764 = vmatprep.subr.bf16.mxu0 0
        %765 = vmatpush1.bf16.xpose.msra.mxu0 0
        %766 = vmatprep.subr.bf16.mxu0 0
        %767 = vmatpush1.bf16.xpose.msra.mxu0 0
        %768 = vmatprep.subr.bf16.mxu0 0
        %769 = vmatpush1.bf16.xpose.msra.mxu0 0
        %770 = vmatprep.subr.bf16.mxu0 0
        %771 = vmatpush1.bf16.xpose.msra.mxu0 0
        %772 = vmatprep.subr.bf16.mxu0 0
        %773 = vmatpush1.bf16.xpose.msra.mxu0 0
        %774 = vmatprep.subr.bf16.mxu0 0
        %775 = vmatpush1.bf16.xpose.msra.mxu0 0
        %776 = vmatprep.subr.bf16.mxu0 0
        %777 = vmatpush1.bf16.xpose.msra.mxu0 0
        %778 = vmatprep.subr.bf16.mxu0 0
        %779 = vmatpush1.bf16.xpose.msra.mxu0 0
        %780 = vmatprep.subr.bf16.mxu0 0
        %781 = vmatpush1.bf16.xpose.msra.mxu0 0
        %782 = vmatprep.subr.bf16.mxu0 0
        %783 = vmatpush1.bf16.xpose.msra.mxu0 0
        %784 = vmatprep.subr.bf16.mxu0 0
        %785 = vmatpush1.bf16.xpose.msra.mxu0 0
        %786 = vmatprep.mubr.bf16.mxu0 0
        %787 = vmatmul.mubr.bf16.gmra.mrb[0].mxu0 %v620
        %v788 = vpop.f32.mrb[0].mxu0
        %v789 = vadd.f32 0.0, %v788
        %v790 = vpop.f32.mrb[0].mxu0
        %v791 = vpop.f32.mrb[0].mxu0
        %v792 = vpop.f32.mrb[0].mxu0
        %793 = vdwg.mxu0
        %v794 = vadd.f32 %v733, %v789
        %795 = vst.msk [vmem:[#allocation4] sm:$0xff] %vm618, %v794
        // Predicated region
        $region69: #{tpu_custom_call.1} parent=47 // pred_check
          %p796 = pneg %p594
        $region70: #{tpu_custom_call.1} parent=47 // pred_check_branch
          %798 = sbr.rel (%p796) target = $region72
        $region71: #{tpu_custom_call.1} parent=47 // pred_region
          %v799 = vld [vmem:[#allocation2] sm:$0xff]
          %v800 = vld [vmem:[%s586] sm:$0x1]
          %v802 = vlaneseq
          %v803 = vshrl.u32 %v802, 7
          %v804 = vsub.s32 0, %v803
          %v805 = vrot.slane %v800, %v804
          %v807 = vadd.f32 %v799, %v805
          %v808 = vpack.c.bf16 %v807, %v807
          %vm809 = vcmask 257024
          %810 = vst.msk [vmem:[%s566] sm:$0xf] %vm809, %v808
          %v811 = vld [vmem:[#allocation3] sm:$0xff]
          %v812 = vld [vmem:[%s589] sm:$0x1]
          %v814 = vlaneseq
          %v815 = vshrl.u32 %v814, 7
          %v816 = vsub.s32 0, %v815
          %v817 = vrot.slane %v812, %v816
          %v819 = vadd.f32 %v811, %v817
          %v820 = vpack.c.bf16 %v819, %v819
          %821 = vst.msk [vmem:[%s573] sm:$0xf] %vm809, %v820
          %v822 = vld [vmem:[#allocation4] sm:$0xff]
          %v823 = vld [vmem:[%s592] sm:$0x1]
          %v825 = vlaneseq
          %v826 = vshrl.u32 %v825, 7
          %v827 = vsub.s32 0, %v826
          %v828 = vrot.slane %v823, %v827
          %v830 = vadd.f32 %v822, %v828
          %v831 = vpack.c.bf16 %v830, %v830
          %832 = vst.msk [vmem:[%s580] sm:$0xf] %vm809, %v831
        $region72: #{tpu_custom_call.1} parent=47 // pred_fallthru
          _
        %s833 = sand.u32 %s272, 1
        %s834 = scalar_lea.sflag [#allocation7], %s833
        %s835 = sand.u32 %s272, 1
        %s836 = smul.addr %s835, 4
        %s837 = scalar_lea.vmem [#allocation13], %s836
        %s838 = sand.u32 %s36, 1
        %s839 = scalar_lea.sflag [#allocation15], %s838
        %s840 = sand.u32 %s302, 1
        %s841 = smul.addr %s840, 4
        %s842 = scalar_lea.vmem [#allocation14], %s841
        %s843 = sand.u32 %s36, 1
        %s844 = scalar_lea.sflag [#allocation15], %s843
        %s845 = sand.u32 %s332, 1
        %s846 = smul.addr %s845, 4
        %s847 = scalar_lea.vmem [#allocation16], %s846
        // Predicated region
        $region73: #{tpu_custom_call.1} parent=47 // pred_check
          %p848 = pneg %p282
        $region74: #{tpu_custom_call.1} parent=47 // pred_check_branch
          %850 = sbr.rel (%p848) target = $region76
        $region75: #{tpu_custom_call.1} parent=47 // pred_region
          %s852 = ssub.s32 64, 64
          %853 = vsyncadd %s834, %s852
          %s854 = sadd.s32 %s44, %s43
          %s855 = sadd.s32 %s854, %s42
          %s856 = smul.addr %s855, 64
          %s857 = scalar_lea.hbm %s7, %s856
          %s859 = sshll.u32 %s837, 4
          %s860 = int_to_ptr.vmem [resolvable:$true] %s859
          %862 = dma.vmem_to_hbm [thread:$0]  %s860, 64, %s857, %s834
        $region76: #{tpu_custom_call.1} parent=47 // pred_fallthru
          _
        // Predicated region
        $region77: #{tpu_custom_call.1} parent=47 // pred_check
          %p863 = pneg %p312
        $region78: #{tpu_custom_call.1} parent=47 // pred_check_branch
          %865 = sbr.rel (%p863) target = $region80
        $region79: #{tpu_custom_call.1} parent=47 // pred_region
          %s867 = ssub.s32 64, 64
          %868 = vsyncadd %s839, %s867
          %s869 = sadd.s32 %s44, %s43
          %s870 = sadd.s32 %s869, %s42
          %s871 = smul.addr %s870, 64
          %s872 = scalar_lea.hbm %s8, %s871
          %s874 = sshll.u32 %s842, 4
          %s875 = int_to_ptr.vmem [resolvable:$true] %s874
          %877 = dma.vmem_to_hbm [thread:$0]  %s875, 64, %s872, %s839
        $region80: #{tpu_custom_call.1} parent=47 // pred_fallthru
          _
        // Predicated region
        $region81: #{tpu_custom_call.1} parent=47 // pred_check
          %p878 = pneg %p342
        $region82: #{tpu_custom_call.1} parent=47 // pred_check_branch
          %880 = sbr.rel (%p878) target = $region84
        $region83: #{tpu_custom_call.1} parent=47 // pred_region
          %s882 = ssub.s32 64, 64
          %883 = vsyncadd %s844, %s882
          %s884 = sadd.s32 %s44, %s43
          %s885 = sadd.s32 %s884, %s42
          %s886 = smul.addr %s885, 64
          %s887 = scalar_lea.hbm %s9, %s886
          %s889 = sshll.u32 %s847, 4
          %s890 = int_to_ptr.vmem [resolvable:$true] %s889
          %892 = dma.vmem_to_hbm [thread:$0]  %s890, 64, %s887, %s844
        $region84: #{tpu_custom_call.1} parent=47 // pred_fallthru
          _
      $region48: #{tpu_custom_call.1} parent=5 // pred_fallthru
        _
      %p893 = scmp.le.s32.totalorder 2, %s31
      // Predicated region
      $region85: #{tpu_custom_call.1} parent=5 // pred_check
        %p894 = pneg %p893
      $region86: #{tpu_custom_call.1} parent=5 // pred_check_branch
        %896 = sbr.rel (%p894) target = $region88
      $region87: #{tpu_custom_call.1} parent=5 // pred_region
        %s897 = ssub.s32 %s31, 2
        // Predicated region
        $region89: #{tpu_custom_call.1} parent=87 // pred_check
          %p898 = pneg %p288
        $region90: #{tpu_custom_call.1} parent=87 // pred_check_branch
          %900 = sbr.rel (%p898) target = $region92
        $region91: #{tpu_custom_call.1} parent=87 // pred_region
          %s901 = sand.u32 %s273, 1
          %s902 = scalar_lea.sflag [#allocation7], %s901
          %s903 = sand.u32 %s273, 1
          %s904 = smul.addr %s903, 4
          %s905 = scalar_lea.vmem [#allocation13], %s904
          %906 = dma.done %s902, 64
        $region92: #{tpu_custom_call.1} parent=87 // pred_fallthru
          _
        // Predicated region
        $region93: #{tpu_custom_call.1} parent=87 // pred_check
          %p907 = pneg %p318
        $region94: #{tpu_custom_call.1} parent=87 // pred_check_branch
          %909 = sbr.rel (%p907) target = $region96
        $region95: #{tpu_custom_call.1} parent=87 // pred_region
          %s910 = sand.u32 %s37, 1
          %s911 = scalar_lea.sflag [#allocation15], %s910
          %s912 = sand.u32 %s303, 1
          %s913 = smul.addr %s912, 4
          %s914 = scalar_lea.vmem [#allocation14], %s913
          %915 = dma.done %s911, 64
        $region96: #{tpu_custom_call.1} parent=87 // pred_fallthru
          _
        // Predicated region
        $region97: #{tpu_custom_call.1} parent=87 // pred_check
          %p916 = pneg %p348
        $region98: #{tpu_custom_call.1} parent=87 // pred_check_branch
          %918 = sbr.rel (%p916) target = $region100
        $region99: #{tpu_custom_call.1} parent=87 // pred_region
          %s919 = sand.u32 %s37, 1
          %s920 = scalar_lea.sflag [#allocation15], %s919
          %s921 = sand.u32 %s333, 1
          %s922 = smul.addr %s921, 4
          %s923 = scalar_lea.vmem [#allocation16], %s922
          %924 = dma.done %s920, 64
        $region100: #{tpu_custom_call.1} parent=87 // pred_fallthru
          _
      $region88: #{tpu_custom_call.1} parent=5 // pred_fallthru
        _
    $region6: #{tpu_custom_call.1} parent=1 // loop_footer
      %s35 = sadd.s32 1, %s31
    $region7: #{tpu_custom_call.1} parent=1 // loop_footer_branch
      %30 = sbr.rel target = $region3
    $region8: #{tpu_custom_call.1} parent=1 // loop_exit
      _
    %925 = vsyncpa [#allocation6], 1
    %s926 = scalar_lea.sflag [#allocation6], 1
    %927 = vsyncpa %s926, 1
    %928 = vsyncpa [#allocation9], 1
    %s929 = scalar_lea.sflag [#allocation9], 1
    %930 = vsyncpa %s929, 1
    %931 = vsyncpa [#allocation12], 1
    %s932 = scalar_lea.sflag [#allocation12], 1
    %933 = vsyncpa %s932, 1
    %934 = vsyncpa [#allocation7], 1
    %s935 = scalar_lea.sflag [#allocation7], 1
    %936 = vsyncpa %s935, 1
    %937 = vsyncpa [#allocation15], 1
    %s938 = scalar_lea.sflag [#allocation15], 1
    %939 = vsyncpa %s938, 1

</llo_original>
